<compile_context>
chip_gen: v7x
topology: tpu7x:2x2x1
jax: 0.10.0
libtpu: 0.0.40
codegen_flags: <defaults>
</compile_context>

<pallas_src>
import jax
import jax.numpy as jnp
import numpy as np
from jax.experimental import pallas as pl
from jax.experimental.pallas import tpu as pltpu


def rnn_kernel(x_ref, w_ih_ref, w_hh_ref, b_ref, h_out_ref):
    """x_ref: (T*B, E) embedded tokens, time-major rows.
    w_ih_ref: (E, H), w_hh_ref: (H, H), b_ref: (1, H) = b_ih + b_hh.
    h_out_ref: (B, H) final hidden state."""
    TB, _ = x_ref.shape
    B, H = h_out_ref.shape
    T = TB // B  # static Python int

    # Phase 1 (non-recurrent): one batched MXU matmul for the input projection.
    xw = (
        jnp.dot(x_ref[...], w_ih_ref[...], preferred_element_type=jnp.float32)
        + b_ref[...]
    )  # (T*B, H)

    # Phase 2 (serial recurrence): only (B,H)@(H,H) + tanh per step.
    w_hh = w_hh_ref[...]
    h = jnp.zeros((B, H), jnp.float32)
    for t in range(T):  # T is static -> fully unrolled, static 8-aligned slices
        h = jnp.tanh(
            xw[t * B:(t + 1) * B, :]
            + jnp.dot(h, w_hh, preferred_element_type=jnp.float32)
        )

    h_out_ref[...] = h


def rnn_forward(sequence, emb_table, w_ih, w_hh, b_ih, b_hh, w_fc, b_fc):
    """sequence: (T, B) int32 token ids. Returns (B, 1) float32 logits."""
    T, B = sequence.shape
    E = emb_table.shape[1]
    H = w_ih.shape[0]

    # Embedding lookup (gather) kept in plain JAX glue.
    # TODO(synk): fuse the embedding gather into the kernel (SMEM token ids +
    # per-row DMA gather) to avoid the HBM round-trip for X at large T*B*E.
    x = jnp.take(emb_table, sequence, axis=0)            # (T, B, E)
    x2d = x.reshape(T * B, E)                            # time-major rows

    # Pre-transpose weights so the kernel does row-major (rows, .) @ (., H).
    w_ih_t = w_ih.T                                      # (E, H)
    w_hh_t = w_hh.T                                      # (H, H)
    b = (b_ih + b_hh).reshape(1, H)                      # (1, H)

    h_final = pl.pallas_call(
        rnn_kernel,
        out_shape=jax.ShapeDtypeStruct((B, H), jnp.float32),
        in_specs=[
            pl.BlockSpec(memory_space=pltpu.MemorySpace.VMEM),  # x2d
            pl.BlockSpec(memory_space=pltpu.MemorySpace.VMEM),  # W_ih^T
            pl.BlockSpec(memory_space=pltpu.MemorySpace.VMEM),  # W_hh^T
            pl.BlockSpec(memory_space=pltpu.MemorySpace.VMEM),  # b_ih + b_hh
        ],
        out_specs=pl.BlockSpec(memory_space=pltpu.MemorySpace.VMEM),
    )(x2d, w_ih_t, w_hh_t, b)

    # Tiny H->1 fc in XLA (keeps the kernel's output store lane-dense).
    return h_final @ w_fc.T + b_fc                        # (B, 1)


def rnn_reference(sequence, emb_table, w_ih, w_hh, b_ih, b_hh, w_fc, b_fc):
    """Pure-JAX reference matching PyTorch nn.Embedding + nn.RNN + nn.Linear."""
    x = jnp.take(emb_table, sequence, axis=0)             # (T, B, E)
    B = sequence.shape[1]
    H = w_ih.shape[0]
    h0 = jnp.zeros((B, H), jnp.float32)

    def step(h, x_t):
        h_new = jnp.tanh(x_t @ w_ih.T + b_ih + h @ w_hh.T + b_hh)
        return h_new, None

    h_T, _ = jax.lax.scan(step, h0, x)
    return h_T @ w_fc.T + b_fc


if __name__ == "__main__":
    # Small synthetic shapes consistent with the module.
    T = 8                 # sequence length
    B = 8                 # batch
    V = 50                # synthetic vocab size (input_dimension)
    E = 100               # embedding_dimension
    H = 32                # hidden_dimension
    O = 1                 # output_dimension

    key = jax.random.PRNGKey(0)
    keys = jax.random.split(key, 8)

    sequence = jax.random.randint(keys[0], (T, B), 0, V, dtype=jnp.int32)
    emb_table = jax.random.normal(keys[1], (V, E), jnp.float32) * 0.1
    scale = 1.0 / np.sqrt(H)
    w_ih = jax.random.uniform(keys[2], (H, E), jnp.float32, -scale, scale)
    w_hh = jax.random.uniform(keys[3], (H, H), jnp.float32, -scale, scale)
    b_ih = jax.random.uniform(keys[4], (H,), jnp.float32, -scale, scale)
    b_hh = jax.random.uniform(keys[5], (H,), jnp.float32, -scale, scale)
    w_fc = jax.random.uniform(keys[6], (O, H), jnp.float32, -scale, scale)
    b_fc = jax.random.uniform(keys[7], (O,), jnp.float32, -scale, scale)

    out = rnn_forward(sequence, emb_table, w_ih, w_hh, b_ih, b_hh, w_fc, b_fc)
    out = jax.block_until_ready(out)

    ref = rnn_reference(sequence, emb_table, w_ih, w_hh, b_ih, b_hh, w_fc, b_fc)
    np.testing.assert_allclose(np.asarray(out), np.asarray(ref),
                               rtol=1e-5, atol=1e-5)
    assert out.shape == (B, O)

    print("KERNEL_OK")
</pallas_src>

<mosaic_0001>
module attributes {stable_mosaic.version = 11 : i64} {
  func.func @rnn_kernel(%arg0: memref<64x100xf32, #tpu.memory_space<vmem>>, %arg1: memref<100x32xf32, #tpu.memory_space<vmem>>, %arg2: memref<32x32xf32, #tpu.memory_space<vmem>>, %arg3: memref<1x32xf32, #tpu.memory_space<vmem>>, %arg4: memref<8x32xf32, #tpu.memory_space<vmem>>) attributes {dimension_semantics = [], scalar_prefetch = 0 : i64, scratch_operands = 0 : i64, tpu.core_type = #tpu.core_type<tc>} {
    %c0 = arith.constant 0 : index
    %c0_0 = arith.constant 0 : index
    %0 = vector.load %arg0[%c0, %c0_0] : memref<64x100xf32, #tpu.memory_space<vmem>>, vector<64x100xf32>
    %c0_1 = arith.constant 0 : index
    %c0_2 = arith.constant 0 : index
    %1 = vector.load %arg1[%c0_1, %c0_2] : memref<100x32xf32, #tpu.memory_space<vmem>>, vector<100x32xf32>
    %cst = arith.constant dense<0.000000e+00> : vector<64x32xf32>
    %2 = tpu.matmul %0, %1, %cst {dimension_numbers = #tpu.dot_dimension_numbers<[1], [0], [0], [1], [0, 0, 1, 1], [], []>} : vector<64x100xf32>, vector<100x32xf32>, vector<64x32xf32> -> vector<64x32xf32>
    %c0_3 = arith.constant 0 : index
    %c0_4 = arith.constant 0 : index
    %3 = vector.load %arg3[%c0_3, %c0_4] : memref<1x32xf32, #tpu.memory_space<vmem>>, vector<1x32xf32>
    %4 = vector.broadcast %3 : vector<1x32xf32> to vector<64x32xf32>
    %5 = arith.addf %2, %4 : vector<64x32xf32>
    %c0_5 = arith.constant 0 : index
    %c0_6 = arith.constant 0 : index
    %6 = vector.load %arg2[%c0_5, %c0_6] : memref<32x32xf32, #tpu.memory_space<vmem>>, vector<32x32xf32>
    %cst_7 = arith.constant 0.000000e+00 : f32
    %7 = vector.broadcast %cst_7 : f32 to vector<8x32xf32>
    %8 = vector.extract_strided_slice %5 {offsets = [0, 0], sizes = [8, 32], strides = [1, 1]} : vector<64x32xf32> to vector<8x32xf32>
    %cst_8 = arith.constant dense<0.000000e+00> : vector<8x32xf32>
    %9 = tpu.matmul %7, %6, %cst_8 {dimension_numbers = #tpu.dot_dimension_numbers<[1], [0], [0], [1], [0, 0, 1, 1], [], []>} : vector<8x32xf32>, vector<32x32xf32>, vector<8x32xf32> -> vector<8x32xf32>
    %10 = arith.addf %8, %9 : vector<8x32xf32>
    %11 = math.tanh %10 : vector<8x32xf32>
    %12 = vector.extract_strided_slice %5 {offsets = [8, 0], sizes = [8, 32], strides = [1, 1]} : vector<64x32xf32> to vector<8x32xf32>
    %cst_9 = arith.constant dense<0.000000e+00> : vector<8x32xf32>
    %13 = tpu.matmul %11, %6, %cst_9 {dimension_numbers = #tpu.dot_dimension_numbers<[1], [0], [0], [1], [0, 0, 1, 1], [], []>} : vector<8x32xf32>, vector<32x32xf32>, vector<8x32xf32> -> vector<8x32xf32>
    %14 = arith.addf %12, %13 : vector<8x32xf32>
    %15 = math.tanh %14 : vector<8x32xf32>
    %16 = vector.extract_strided_slice %5 {offsets = [16, 0], sizes = [8, 32], strides = [1, 1]} : vector<64x32xf32> to vector<8x32xf32>
    %cst_10 = arith.constant dense<0.000000e+00> : vector<8x32xf32>
    %17 = tpu.matmul %15, %6, %cst_10 {dimension_numbers = #tpu.dot_dimension_numbers<[1], [0], [0], [1], [0, 0, 1, 1], [], []>} : vector<8x32xf32>, vector<32x32xf32>, vector<8x32xf32> -> vector<8x32xf32>
    %18 = arith.addf %16, %17 : vector<8x32xf32>
    %19 = math.tanh %18 : vector<8x32xf32>
    %20 = vector.extract_strided_slice %5 {offsets = [24, 0], sizes = [8, 32], strides = [1, 1]} : vector<64x32xf32> to vector<8x32xf32>
    %cst_11 = arith.constant dense<0.000000e+00> : vector<8x32xf32>
    %21 = tpu.matmul %19, %6, %cst_11 {dimension_numbers = #tpu.dot_dimension_numbers<[1], [0], [0], [1], [0, 0, 1, 1], [], []>} : vector<8x32xf32>, vector<32x32xf32>, vector<8x32xf32> -> vector<8x32xf32>
    %22 = arith.addf %20, %21 : vector<8x32xf32>
    %23 = math.tanh %22 : vector<8x32xf32>
    %24 = vector.extract_strided_slice %5 {offsets = [32, 0], sizes = [8, 32], strides = [1, 1]} : vector<64x32xf32> to vector<8x32xf32>
    %cst_12 = arith.constant dense<0.000000e+00> : vector<8x32xf32>
    %25 = tpu.matmul %23, %6, %cst_12 {dimension_numbers = #tpu.dot_dimension_numbers<[1], [0], [0], [1], [0, 0, 1, 1], [], []>} : vector<8x32xf32>, vector<32x32xf32>, vector<8x32xf32> -> vector<8x32xf32>
    %26 = arith.addf %24, %25 : vector<8x32xf32>
    %27 = math.tanh %26 : vector<8x32xf32>
    %28 = vector.extract_strided_slice %5 {offsets = [40, 0], sizes = [8, 32], strides = [1, 1]} : vector<64x32xf32> to vector<8x32xf32>
    %cst_13 = arith.constant dense<0.000000e+00> : vector<8x32xf32>
    %29 = tpu.matmul %27, %6, %cst_13 {dimension_numbers = #tpu.dot_dimension_numbers<[1], [0], [0], [1], [0, 0, 1, 1], [], []>} : vector<8x32xf32>, vector<32x32xf32>, vector<8x32xf32> -> vector<8x32xf32>
    %30 = arith.addf %28, %29 : vector<8x32xf32>
    %31 = math.tanh %30 : vector<8x32xf32>
    %32 = vector.extract_strided_slice %5 {offsets = [48, 0], sizes = [8, 32], strides = [1, 1]} : vector<64x32xf32> to vector<8x32xf32>
    %cst_14 = arith.constant dense<0.000000e+00> : vector<8x32xf32>
    %33 = tpu.matmul %31, %6, %cst_14 {dimension_numbers = #tpu.dot_dimension_numbers<[1], [0], [0], [1], [0, 0, 1, 1], [], []>} : vector<8x32xf32>, vector<32x32xf32>, vector<8x32xf32> -> vector<8x32xf32>
    %34 = arith.addf %32, %33 : vector<8x32xf32>
    %35 = math.tanh %34 : vector<8x32xf32>
    %36 = vector.extract_strided_slice %5 {offsets = [56, 0], sizes = [8, 32], strides = [1, 1]} : vector<64x32xf32> to vector<8x32xf32>
    %cst_15 = arith.constant dense<0.000000e+00> : vector<8x32xf32>
    %37 = tpu.matmul %35, %6, %cst_15 {dimension_numbers = #tpu.dot_dimension_numbers<[1], [0], [0], [1], [0, 0, 1, 1], [], []>} : vector<8x32xf32>, vector<32x32xf32>, vector<8x32xf32> -> vector<8x32xf32>
    %38 = arith.addf %36, %37 : vector<8x32xf32>
    %39 = math.tanh %38 : vector<8x32xf32>
    %c0_16 = arith.constant 0 : index
    %c0_17 = arith.constant 0 : index
    %40 = vector.load %arg4[%c0_16, %c0_17] : memref<8x32xf32, #tpu.memory_space<vmem>>, vector<8x32xf32>
    tpu.vector_store %arg4[%c0_16, %c0_17], %39 {strides = array<i32>} : memref<8x32xf32, #tpu.memory_space<vmem>>, vector<8x32xf32>,
    return
  }
}

</mosaic_0001>

<llo_original>
// kernel: tpu_custom_call.1
$region0: #{tpu_custom_call.1}
  #allocation0 [shape = 'u32[]', space=smem, size = 0x4, offset = 0x4, fixed_abs, tag = 'smem constant byte address 0x4 - core index']
  #allocation1 [shape = 'u32[144,128]{1,0:T(1,128)}', space=vmem, size = 0x12000, scoped, tag = 'internal scratch']
  %s0 = inlined_call_operand.vmem [shape: f32[64,100], index: 0, kind: input, shape index: {}]
  %s1 = inlined_call_operand.vmem [shape: f32[100,32], index: 1, kind: input, shape index: {}]
  %s2 = inlined_call_operand.vmem [shape: f32[32,32], index: 2, kind: input, shape index: {}]
  %s3 = inlined_call_operand.vmem [shape: f32[1,32], index: 3, kind: input, shape index: {}]
  %s4 = inlined_call_operand.hbm [shape: f32[8,32], index: 4, kind: output, shape index: {}]
  %s5 = sld [smem:[#allocation0]]
  $region26: #{tpu_custom_call.1} parent=0
    _
  %s7 = ssub.s32 1, %s5
  %s8 = scalar_select 0, %s7, %s5
  $region1: #{tpu_custom_call.1} parent=0
    #allocation2 [shape = 'u8[4096]{0}', space=vmem, size = 0x1000, scoped, tag = 'output window, operand 0, single buffered']
    #allocation3 [shape = 's32[1]{0}', space=sflag, size = 0x4, scoped, tag = 'scoped memory for tpu_custom_call.1']
    %9 = vsyncpa [#allocation3], 0
    // Predicated region
    $region2: #{tpu_custom_call.1} parent=1 // pred_check
      _
    $region3: #{tpu_custom_call.1} parent=1 // pred_check_branch
      %11 = sbr.rel (0) target = $region5
    $region4: #{tpu_custom_call.1} parent=1 // pred_region
      _
    $region5: #{tpu_custom_call.1} parent=1 // pred_fallthru
      _
    // Predicated region
    $region6: #{tpu_custom_call.1} parent=1 // pred_check
      _
    $region7: #{tpu_custom_call.1} parent=1 // pred_check_branch
      %13 = sbr.rel (0) target = $region9
    $region8: #{tpu_custom_call.1} parent=1 // pred_region
      _
    $region9: #{tpu_custom_call.1} parent=1 // pred_fallthru
      _
    // Predicated region
    $region10: #{tpu_custom_call.1} parent=1 // pred_check
      _
    $region11: #{tpu_custom_call.1} parent=1 // pred_check_branch
      %15 = sbr.rel (0) target = $region13
    $region12: #{tpu_custom_call.1} parent=1 // pred_region
      _
    $region13: #{tpu_custom_call.1} parent=1 // pred_fallthru
      _
    // Predicated region
    $region14: #{tpu_custom_call.1} parent=1 // pred_check
      _
    $region15: #{tpu_custom_call.1} parent=1 // pred_check_branch
      %17 = sbr.rel (0) target = $region17
    $region16: #{tpu_custom_call.1} parent=1 // pred_region
      _
    $region17: #{tpu_custom_call.1} parent=1 // pred_fallthru
      _
    %v18 = vld [vmem:[%s0] sm:$0xff]
    %v19 = vld [vmem:[%s0 + $0x8] sm:$0xff]
    %v20 = vld [vmem:[%s0 + $0x10] sm:$0xff]
    %v21 = vld [vmem:[%s0 + $0x18] sm:$0xff]
    %v22 = vld [vmem:[%s0 + $0x20] sm:$0xff]
    %v23 = vld [vmem:[%s0 + $0x28] sm:$0xff]
    %v24 = vld [vmem:[%s0 + $0x30] sm:$0xff]
    %v25 = vld [vmem:[%s0 + $0x38] sm:$0xff]
    %v26 = vld [vmem:[%s1] sm:$0xff]
    %v27 = vld [vmem:[%s1 + $0x8] sm:$0xff]
    %v28 = vld [vmem:[%s1 + $0x10] sm:$0xff]
    %v29 = vld [vmem:[%s1 + $0x18] sm:$0xff]
    %v30 = vld [vmem:[%s1 + $0x20] sm:$0xff]
    %v31 = vld [vmem:[%s1 + $0x28] sm:$0xff]
    %v32 = vld [vmem:[%s1 + $0x30] sm:$0xff]
    %v33 = vld [vmem:[%s1 + $0x38] sm:$0xff]
    %v34 = vld [vmem:[%s1 + $0x40] sm:$0xff]
    %v35 = vld [vmem:[%s1 + $0x48] sm:$0xff]
    %v36 = vld [vmem:[%s1 + $0x50] sm:$0xff]
    %v37 = vld [vmem:[%s1 + $0x58] sm:$0xff]
    %v38 = vld [vmem:[%s1 + $0x60] sm:$0xf]
    %v39 = vld [vmem:[%s3] sm:$0x1]
    %v41 = vlaneseq
    %v42 = vshrl.u32 %v41, 7
    %v43 = vsub.s32 0, %v42
    %v44 = vrot.slane %v39, %v43
    %vm46 = vcmask 818176
    %v48 = vsel %vm46, %v18, 0
    %v51 = vsel %vm46, %v19, 0
    %v54 = vsel %vm46, %v20, 0
    %v57 = vsel %vm46, %v21, 0
    %v60 = vsel %vm46, %v22, 0
    %v63 = vsel %vm46, %v23, 0
    %v66 = vsel %vm46, %v24, 0
    %v69 = vsel %vm46, %v25, 0
    %vm71 = vcmask 1043456
    %v73 = vsel %vm71, %v38, 0
    %75 = vmatprep.subr.mxu0 0.0
    %76 = vmatpush1.msra.mxu0 %v26
    %77 = vmatprep.subr.mxu0 0.0
    %78 = vmatpush1.msra.mxu0 %v27
    %79 = vmatprep.subr.mxu0 0.0
    %80 = vmatpush1.msra.mxu0 %v28
    %81 = vmatprep.subr.mxu0 0.0
    %82 = vmatpush1.msra.mxu0 %v29
    %83 = vmatprep.subr.mxu0 0.0
    %84 = vmatpush1.msra.mxu0 %v30
    %85 = vmatprep.subr.mxu0 0.0
    %86 = vmatpush1.msra.mxu0 %v31
    %87 = vmatprep.subr.mxu0 0.0
    %88 = vmatpush1.msra.mxu0 %v32
    %89 = vmatprep.subr.mxu0 0.0
    %90 = vmatpush1.msra.mxu0 %v33
    %91 = vmatprep.subr.mxu0 0.0
    %92 = vmatpush1.msra.mxu0 %v34
    %93 = vmatprep.subr.mxu0 0.0
    %94 = vmatpush1.msra.mxu0 %v35
    %95 = vmatprep.subr.mxu0 0.0
    %96 = vmatpush1.msra.mxu0 %v36
    %97 = vmatprep.subr.mxu0 0.0
    %98 = vmatpush1.msra.mxu0 %v37
    %99 = vmatprep.subr.mxu0 0.0
    %100 = vmatpush1.msra.mxu0 %v73
    %101 = vmatprep.subr.mxu0 0.0
    %102 = vmatpush1.msra.mxu0 0.0
    %103 = vmatprep.subr.mxu0 0.0
    %104 = vmatpush1.msra.mxu0 0.0
    %105 = vmatprep.subr.mxu0 0.0
    %106 = vmatpush1.msra.mxu0 0.0
    %107 = vmatprep.subr.mxu0 0.0
    %108 = vmatpush1.msra.mxu0 0.0
    %109 = vmatprep.subr.mxu0 0.0
    %110 = vmatpush1.msra.mxu0 0.0
    %111 = vmatprep.subr.mxu0 0.0
    %112 = vmatpush1.msra.mxu0 0.0
    %113 = vmatprep.subr.mxu0 0.0
    %114 = vmatpush1.msra.mxu0 0.0
    %115 = vmatprep.subr.mxu0 0.0
    %116 = vmatpush1.msra.mxu0 0.0
    %117 = vmatprep.subr.mxu0 0.0
    %118 = vmatpush1.msra.mxu0 0.0
    %119 = vmatprep.subr.mxu0 0.0
    %120 = vmatpush1.msra.mxu0 0.0
    %121 = vmatprep.subr.mxu0 0.0
    %122 = vmatpush1.msra.mxu0 0.0
    %123 = vmatprep.subr.mxu0 0.0
    %124 = vmatpush1.msra.mxu0 0.0
    %125 = vmatprep.subr.mxu0 0.0
    %126 = vmatpush1.msra.mxu0 0.0
    %127 = vmatprep.subr.mxu0 0.0
    %128 = vmatpush1.msra.mxu0 0.0
    %129 = vmatprep.subr.mxu0 0.0
    %130 = vmatpush1.msra.mxu0 0.0
    %131 = vmatprep.subr.mxu0 0.0
    %132 = vmatpush1.msra.mxu0 0.0
    %133 = vmatprep.subr.mxu0 0.0
    %134 = vmatpush1.msra.mxu0 0.0
    %135 = vmatprep.subr.mxu0 0.0
    %136 = vmatpush1.msra.mxu0 0.0
    %137 = vmatprep.subr.mxu0 0.0
    %138 = vmatpush1.msra.mxu0 0.0
    %139 = vmatprep.mubr.f32.mxu0 0.0
    %140 = vmatmul.mubr.f32.gmra.mrb[0].mxu0 %v48
    %v141 = vpop.f32.mrb[0].mxu0
    %v142 = vadd.f32 %v44, %v141
    %v143 = vpop.f32.mrb[0].mxu0
    %144 = vmatprep.mubr.f32.mxu0 0.0
    %145 = vmatmul.mubr.f32.gmra.mrb[0].mxu0 %v51
    %v146 = vpop.f32.mrb[0].mxu0
    %v147 = vadd.f32 %v44, %v146
    %v148 = vpop.f32.mrb[0].mxu0
    %149 = vmatprep.mubr.f32.mxu0 0.0
    %150 = vmatmul.mubr.f32.gmra.mrb[0].mxu0 %v54
    %v151 = vpop.f32.mrb[0].mxu0
    %v152 = vadd.f32 %v44, %v151
    %v153 = vpop.f32.mrb[0].mxu0
    %154 = vmatprep.mubr.f32.mxu0 0.0
    %155 = vmatmul.mubr.f32.gmra.mrb[0].mxu0 %v57
    %v156 = vpop.f32.mrb[0].mxu0
    %v157 = vadd.f32 %v44, %v156
    %v158 = vpop.f32.mrb[0].mxu0
    %159 = vmatprep.mubr.f32.mxu0 0.0
    %160 = vmatmul.mubr.f32.gmra.mrb[0].mxu0 %v60
    %v161 = vpop.f32.mrb[0].mxu0
    %v162 = vadd.f32 %v44, %v161
    %v163 = vpop.f32.mrb[0].mxu0
    %164 = vmatprep.mubr.f32.mxu0 0.0
    %165 = vmatmul.mubr.f32.gmra.mrb[0].mxu0 %v63
    %v166 = vpop.f32.mrb[0].mxu0
    %v167 = vadd.f32 %v44, %v166
    %v168 = vpop.f32.mrb[0].mxu0
    %169 = vmatprep.mubr.f32.mxu0 0.0
    %170 = vmatmul.mubr.f32.gmra.mrb[0].mxu0 %v66
    %v171 = vpop.f32.mrb[0].mxu0
    %v172 = vadd.f32 %v44, %v171
    %v173 = vpop.f32.mrb[0].mxu0
    %174 = vmatprep.mubr.f32.mxu0 0.0
    %175 = vmatmul.mubr.f32.gmra.mrb[0].mxu0 %v69
    %v176 = vpop.f32.mrb[0].mxu0
    %v177 = vadd.f32 %v44, %v176
    %v178 = vpop.f32.mrb[0].mxu0
    %179 = vdwg.mxu0
    %v180 = vld [vmem:[%s2] sm:$0xff]
    %v181 = vld [vmem:[%s2 + $0x8] sm:$0xff]
    %v182 = vld [vmem:[%s2 + $0x10] sm:$0xff]
    %v183 = vld [vmem:[%s2 + $0x18] sm:$0xff]
    %vm184 = vcmask 261120
    %v186 = vsel %vm184, 0.0, 0
    %188 = vmatprep.subr.mxu0 0.0
    %189 = vmatpush1.msra.mxu0 %v180
    %190 = vmatprep.subr.mxu0 0.0
    %191 = vmatpush1.msra.mxu0 %v181
    %192 = vmatprep.subr.mxu0 0.0
    %193 = vmatpush1.msra.mxu0 %v182
    %194 = vmatprep.subr.mxu0 0.0
    %195 = vmatpush1.msra.mxu0 %v183
    %196 = vmatprep.subr.mxu0 0.0
    %197 = vmatpush1.msra.mxu0 0.0
    %198 = vmatprep.subr.mxu0 0.0
    %199 = vmatpush1.msra.mxu0 0.0
    %200 = vmatprep.subr.mxu0 0.0
    %201 = vmatpush1.msra.mxu0 0.0
    %202 = vmatprep.subr.mxu0 0.0
    %203 = vmatpush1.msra.mxu0 0.0
    %204 = vmatprep.subr.mxu0 0.0
    %205 = vmatpush1.msra.mxu0 0.0
    %206 = vmatprep.subr.mxu0 0.0
    %207 = vmatpush1.msra.mxu0 0.0
    %208 = vmatprep.subr.mxu0 0.0
    %209 = vmatpush1.msra.mxu0 0.0
    %210 = vmatprep.subr.mxu0 0.0
    %211 = vmatpush1.msra.mxu0 0.0
    %212 = vmatprep.subr.mxu0 0.0
    %213 = vmatpush1.msra.mxu0 0.0
    %214 = vmatprep.subr.mxu0 0.0
    %215 = vmatpush1.msra.mxu0 0.0
    %216 = vmatprep.subr.mxu0 0.0
    %217 = vmatpush1.msra.mxu0 0.0
    %218 = vmatprep.subr.mxu0 0.0
    %219 = vmatpush1.msra.mxu0 0.0
    %220 = vmatprep.subr.mxu0 0.0
    %221 = vmatpush1.msra.mxu0 0.0
    %222 = vmatprep.subr.mxu0 0.0
    %223 = vmatpush1.msra.mxu0 0.0
    %224 = vmatprep.subr.mxu0 0.0
    %225 = vmatpush1.msra.mxu0 0.0
    %226 = vmatprep.subr.mxu0 0.0
    %227 = vmatpush1.msra.mxu0 0.0
    %228 = vmatprep.subr.mxu0 0.0
    %229 = vmatpush1.msra.mxu0 0.0
    %230 = vmatprep.subr.mxu0 0.0
    %231 = vmatpush1.msra.mxu0 0.0
    %232 = vmatprep.subr.mxu0 0.0
    %233 = vmatpush1.msra.mxu0 0.0
    %234 = vmatprep.subr.mxu0 0.0
    %235 = vmatpush1.msra.mxu0 0.0
    %236 = vmatprep.subr.mxu0 0.0
    %237 = vmatpush1.msra.mxu0 0.0
    %238 = vmatprep.subr.mxu0 0.0
    %239 = vmatpush1.msra.mxu0 0.0
    %240 = vmatprep.subr.mxu0 0.0
    %241 = vmatpush1.msra.mxu0 0.0
    %242 = vmatprep.subr.mxu0 0.0
    %243 = vmatpush1.msra.mxu0 0.0
    %244 = vmatprep.subr.mxu0 0.0
    %245 = vmatpush1.msra.mxu0 0.0
    %246 = vmatprep.subr.mxu0 0.0
    %247 = vmatpush1.msra.mxu0 0.0
    %248 = vmatprep.subr.mxu0 0.0
    %249 = vmatpush1.msra.mxu0 0.0
    %250 = vmatprep.subr.mxu0 0.0
    %251 = vmatpush1.msra.mxu0 0.0
    %252 = vmatprep.mubr.f32.mxu0 0.0
    %253 = vmatmul.mubr.f32.gmra.mrb[0].mxu0 %v186
    %v254 = vpop.f32.mrb[0].mxu0
    %v255 = vadd.f32 0.0, %v254
    %v256 = vpop.f32.mrb[0].mxu0
    %257 = vdwg.mxu0
    %v258 = vadd.f32 %v142, %v255
    %v259 = vtanh.pop %v258
    %v261 = vsel %vm184, %v259, 0
    %263 = vmatprep.subr.mxu0 0.0
    %264 = vmatpush1.msra.mxu0 %v180
    %265 = vmatprep.subr.mxu0 0.0
    %266 = vmatpush1.msra.mxu0 %v181
    %267 = vmatprep.subr.mxu0 0.0
    %268 = vmatpush1.msra.mxu0 %v182
    %269 = vmatprep.subr.mxu0 0.0
    %270 = vmatpush1.msra.mxu0 %v183
    %271 = vmatprep.subr.mxu0 0.0
    %272 = vmatpush1.msra.mxu0 0.0
    %273 = vmatprep.subr.mxu0 0.0
    %274 = vmatpush1.msra.mxu0 0.0
    %275 = vmatprep.subr.mxu0 0.0
    %276 = vmatpush1.msra.mxu0 0.0
    %277 = vmatprep.subr.mxu0 0.0
    %278 = vmatpush1.msra.mxu0 0.0
    %279 = vmatprep.subr.mxu0 0.0
    %280 = vmatpush1.msra.mxu0 0.0
    %281 = vmatprep.subr.mxu0 0.0
    %282 = vmatpush1.msra.mxu0 0.0
    %283 = vmatprep.subr.mxu0 0.0
    %284 = vmatpush1.msra.mxu0 0.0
    %285 = vmatprep.subr.mxu0 0.0
    %286 = vmatpush1.msra.mxu0 0.0
    %287 = vmatprep.subr.mxu0 0.0
    %288 = vmatpush1.msra.mxu0 0.0
    %289 = vmatprep.subr.mxu0 0.0
    %290 = vmatpush1.msra.mxu0 0.0
    %291 = vmatprep.subr.mxu0 0.0
    %292 = vmatpush1.msra.mxu0 0.0
    %293 = vmatprep.subr.mxu0 0.0
    %294 = vmatpush1.msra.mxu0 0.0
    %295 = vmatprep.subr.mxu0 0.0
    %296 = vmatpush1.msra.mxu0 0.0
    %297 = vmatprep.subr.mxu0 0.0
    %298 = vmatpush1.msra.mxu0 0.0
    %299 = vmatprep.subr.mxu0 0.0
    %300 = vmatpush1.msra.mxu0 0.0
    %301 = vmatprep.subr.mxu0 0.0
    %302 = vmatpush1.msra.mxu0 0.0
    %303 = vmatprep.subr.mxu0 0.0
    %304 = vmatpush1.msra.mxu0 0.0
    %305 = vmatprep.subr.mxu0 0.0
    %306 = vmatpush1.msra.mxu0 0.0
    %307 = vmatprep.subr.mxu0 0.0
    %308 = vmatpush1.msra.mxu0 0.0
    %309 = vmatprep.subr.mxu0 0.0
    %310 = vmatpush1.msra.mxu0 0.0
    %311 = vmatprep.subr.mxu0 0.0
    %312 = vmatpush1.msra.mxu0 0.0
    %313 = vmatprep.subr.mxu0 0.0
    %314 = vmatpush1.msra.mxu0 0.0
    %315 = vmatprep.subr.mxu0 0.0
    %316 = vmatpush1.msra.mxu0 0.0
    %317 = vmatprep.subr.mxu0 0.0
    %318 = vmatpush1.msra.mxu0 0.0
    %319 = vmatprep.subr.mxu0 0.0
    %320 = vmatpush1.msra.mxu0 0.0
    %321 = vmatprep.subr.mxu0 0.0
    %322 = vmatpush1.msra.mxu0 0.0
    %323 = vmatprep.subr.mxu0 0.0
    %324 = vmatpush1.msra.mxu0 0.0
    %325 = vmatprep.subr.mxu0 0.0
    %326 = vmatpush1.msra.mxu0 0.0
    %327 = vmatprep.mubr.f32.mxu0 0.0
    %328 = vmatmul.mubr.f32.gmra.mrb[0].mxu0 %v261
    %v329 = vpop.f32.mrb[0].mxu0
    %v330 = vadd.f32 0.0, %v329
    %v331 = vpop.f32.mrb[0].mxu0
    %332 = vdwg.mxu0
    %v333 = vadd.f32 %v147, %v330
    %v334 = vtanh.pop %v333
    %v336 = vsel %vm184, %v334, 0
    %338 = vmatprep.subr.mxu0 0.0
    %339 = vmatpush1.msra.mxu0 %v180
    %340 = vmatprep.subr.mxu0 0.0
    %341 = vmatpush1.msra.mxu0 %v181
    %342 = vmatprep.subr.mxu0 0.0
    %343 = vmatpush1.msra.mxu0 %v182
    %344 = vmatprep.subr.mxu0 0.0
    %345 = vmatpush1.msra.mxu0 %v183
    %346 = vmatprep.subr.mxu0 0.0
    %347 = vmatpush1.msra.mxu0 0.0
    %348 = vmatprep.subr.mxu0 0.0
    %349 = vmatpush1.msra.mxu0 0.0
    %350 = vmatprep.subr.mxu0 0.0
    %351 = vmatpush1.msra.mxu0 0.0
    %352 = vmatprep.subr.mxu0 0.0
    %353 = vmatpush1.msra.mxu0 0.0
    %354 = vmatprep.subr.mxu0 0.0
    %355 = vmatpush1.msra.mxu0 0.0
    %356 = vmatprep.subr.mxu0 0.0
    %357 = vmatpush1.msra.mxu0 0.0
    %358 = vmatprep.subr.mxu0 0.0
    %359 = vmatpush1.msra.mxu0 0.0
    %360 = vmatprep.subr.mxu0 0.0
    %361 = vmatpush1.msra.mxu0 0.0
    %362 = vmatprep.subr.mxu0 0.0
    %363 = vmatpush1.msra.mxu0 0.0
    %364 = vmatprep.subr.mxu0 0.0
    %365 = vmatpush1.msra.mxu0 0.0
    %366 = vmatprep.subr.mxu0 0.0
    %367 = vmatpush1.msra.mxu0 0.0
    %368 = vmatprep.subr.mxu0 0.0
    %369 = vmatpush1.msra.mxu0 0.0
    %370 = vmatprep.subr.mxu0 0.0
    %371 = vmatpush1.msra.mxu0 0.0
    %372 = vmatprep.subr.mxu0 0.0
    %373 = vmatpush1.msra.mxu0 0.0
    %374 = vmatprep.subr.mxu0 0.0
    %375 = vmatpush1.msra.mxu0 0.0
    %376 = vmatprep.subr.mxu0 0.0
    %377 = vmatpush1.msra.mxu0 0.0
    %378 = vmatprep.subr.mxu0 0.0
    %379 = vmatpush1.msra.mxu0 0.0
    %380 = vmatprep.subr.mxu0 0.0
    %381 = vmatpush1.msra.mxu0 0.0
    %382 = vmatprep.subr.mxu0 0.0
    %383 = vmatpush1.msra.mxu0 0.0
    %384 = vmatprep.subr.mxu0 0.0
    %385 = vmatpush1.msra.mxu0 0.0
    %386 = vmatprep.subr.mxu0 0.0
    %387 = vmatpush1.msra.mxu0 0.0
    %388 = vmatprep.subr.mxu0 0.0
    %389 = vmatpush1.msra.mxu0 0.0
    %390 = vmatprep.subr.mxu0 0.0
    %391 = vmatpush1.msra.mxu0 0.0
    %392 = vmatprep.subr.mxu0 0.0
    %393 = vmatpush1.msra.mxu0 0.0
    %394 = vmatprep.subr.mxu0 0.0
    %395 = vmatpush1.msra.mxu0 0.0
    %396 = vmatprep.subr.mxu0 0.0
    %397 = vmatpush1.msra.mxu0 0.0
    %398 = vmatprep.subr.mxu0 0.0
    %399 = vmatpush1.msra.mxu0 0.0
    %400 = vmatprep.subr.mxu0 0.0
    %401 = vmatpush1.msra.mxu0 0.0
    %402 = vmatprep.mubr.f32.mxu0 0.0
    %403 = vmatmul.mubr.f32.gmra.mrb[0].mxu0 %v336
    %v404 = vpop.f32.mrb[0].mxu0
    %v405 = vadd.f32 0.0, %v404
    %v406 = vpop.f32.mrb[0].mxu0
    %407 = vdwg.mxu0
    %v408 = vadd.f32 %v152, %v405
    %v409 = vtanh.pop %v408
    %v411 = vsel %vm184, %v409, 0
    %413 = vmatprep.subr.mxu0 0.0
    %414 = vmatpush1.msra.mxu0 %v180
    %415 = vmatprep.subr.mxu0 0.0
    %416 = vmatpush1.msra.mxu0 %v181
    %417 = vmatprep.subr.mxu0 0.0
    %418 = vmatpush1.msra.mxu0 %v182
    %419 = vmatprep.subr.mxu0 0.0
    %420 = vmatpush1.msra.mxu0 %v183
    %421 = vmatprep.subr.mxu0 0.0
    %422 = vmatpush1.msra.mxu0 0.0
    %423 = vmatprep.subr.mxu0 0.0
    %424 = vmatpush1.msra.mxu0 0.0
    %425 = vmatprep.subr.mxu0 0.0
    %426 = vmatpush1.msra.mxu0 0.0
    %427 = vmatprep.subr.mxu0 0.0
    %428 = vmatpush1.msra.mxu0 0.0
    %429 = vmatprep.subr.mxu0 0.0
    %430 = vmatpush1.msra.mxu0 0.0
    %431 = vmatprep.subr.mxu0 0.0
    %432 = vmatpush1.msra.mxu0 0.0
    %433 = vmatprep.subr.mxu0 0.0
    %434 = vmatpush1.msra.mxu0 0.0
    %435 = vmatprep.subr.mxu0 0.0
    %436 = vmatpush1.msra.mxu0 0.0
    %437 = vmatprep.subr.mxu0 0.0
    %438 = vmatpush1.msra.mxu0 0.0
    %439 = vmatprep.subr.mxu0 0.0
    %440 = vmatpush1.msra.mxu0 0.0
    %441 = vmatprep.subr.mxu0 0.0
    %442 = vmatpush1.msra.mxu0 0.0
    %443 = vmatprep.subr.mxu0 0.0
    %444 = vmatpush1.msra.mxu0 0.0
    %445 = vmatprep.subr.mxu0 0.0
    %446 = vmatpush1.msra.mxu0 0.0
    %447 = vmatprep.subr.mxu0 0.0
    %448 = vmatpush1.msra.mxu0 0.0
    %449 = vmatprep.subr.mxu0 0.0
    %450 = vmatpush1.msra.mxu0 0.0
    %451 = vmatprep.subr.mxu0 0.0
    %452 = vmatpush1.msra.mxu0 0.0
    %453 = vmatprep.subr.mxu0 0.0
    %454 = vmatpush1.msra.mxu0 0.0
    %455 = vmatprep.subr.mxu0 0.0
    %456 = vmatpush1.msra.mxu0 0.0
    %457 = vmatprep.subr.mxu0 0.0
    %458 = vmatpush1.msra.mxu0 0.0
    %459 = vmatprep.subr.mxu0 0.0
    %460 = vmatpush1.msra.mxu0 0.0
    %461 = vmatprep.subr.mxu0 0.0
    %462 = vmatpush1.msra.mxu0 0.0
    %463 = vmatprep.subr.mxu0 0.0
    %464 = vmatpush1.msra.mxu0 0.0
    %465 = vmatprep.subr.mxu0 0.0
    %466 = vmatpush1.msra.mxu0 0.0
    %467 = vmatprep.subr.mxu0 0.0
    %468 = vmatpush1.msra.mxu0 0.0
    %469 = vmatprep.subr.mxu0 0.0
    %470 = vmatpush1.msra.mxu0 0.0
    %471 = vmatprep.subr.mxu0 0.0
    %472 = vmatpush1.msra.mxu0 0.0
    %473 = vmatprep.subr.mxu0 0.0
    %474 = vmatpush1.msra.mxu0 0.0
    %475 = vmatprep.subr.mxu0 0.0
    %476 = vmatpush1.msra.mxu0 0.0
    %477 = vmatprep.mubr.f32.mxu0 0.0
    %478 = vmatmul.mubr.f32.gmra.mrb[0].mxu0 %v411
    %v479 = vpop.f32.mrb[0].mxu0
    %v480 = vadd.f32 0.0, %v479
    %v481 = vpop.f32.mrb[0].mxu0
    %482 = vdwg.mxu0
    %v483 = vadd.f32 %v157, %v480
    %v484 = vtanh.pop %v483
    %v486 = vsel %vm184, %v484, 0
    %488 = vmatprep.subr.mxu0 0.0
    %489 = vmatpush1.msra.mxu0 %v180
    %490 = vmatprep.subr.mxu0 0.0
    %491 = vmatpush1.msra.mxu0 %v181
    %492 = vmatprep.subr.mxu0 0.0
    %493 = vmatpush1.msra.mxu0 %v182
    %494 = vmatprep.subr.mxu0 0.0
    %495 = vmatpush1.msra.mxu0 %v183
    %496 = vmatprep.subr.mxu0 0.0
    %497 = vmatpush1.msra.mxu0 0.0
    %498 = vmatprep.subr.mxu0 0.0
    %499 = vmatpush1.msra.mxu0 0.0
    %500 = vmatprep.subr.mxu0 0.0
    %501 = vmatpush1.msra.mxu0 0.0
    %502 = vmatprep.subr.mxu0 0.0
    %503 = vmatpush1.msra.mxu0 0.0
    %504 = vmatprep.subr.mxu0 0.0
    %505 = vmatpush1.msra.mxu0 0.0
    %506 = vmatprep.subr.mxu0 0.0
    %507 = vmatpush1.msra.mxu0 0.0
    %508 = vmatprep.subr.mxu0 0.0
    %509 = vmatpush1.msra.mxu0 0.0
    %510 = vmatprep.subr.mxu0 0.0
    %511 = vmatpush1.msra.mxu0 0.0
    %512 = vmatprep.subr.mxu0 0.0
    %513 = vmatpush1.msra.mxu0 0.0
    %514 = vmatprep.subr.mxu0 0.0
    %515 = vmatpush1.msra.mxu0 0.0
    %516 = vmatprep.subr.mxu0 0.0
    %517 = vmatpush1.msra.mxu0 0.0
    %518 = vmatprep.subr.mxu0 0.0
    %519 = vmatpush1.msra.mxu0 0.0
    %520 = vmatprep.subr.mxu0 0.0
    %521 = vmatpush1.msra.mxu0 0.0
    %522 = vmatprep.subr.mxu0 0.0
    %523 = vmatpush1.msra.mxu0 0.0
    %524 = vmatprep.subr.mxu0 0.0
    %525 = vmatpush1.msra.mxu0 0.0
    %526 = vmatprep.subr.mxu0 0.0
    %527 = vmatpush1.msra.mxu0 0.0
    %528 = vmatprep.subr.mxu0 0.0
    %529 = vmatpush1.msra.mxu0 0.0
    %530 = vmatprep.subr.mxu0 0.0
    %531 = vmatpush1.msra.mxu0 0.0
    %532 = vmatprep.subr.mxu0 0.0
    %533 = vmatpush1.msra.mxu0 0.0
    %534 = vmatprep.subr.mxu0 0.0
    %535 = vmatpush1.msra.mxu0 0.0
    %536 = vmatprep.subr.mxu0 0.0
    %537 = vmatpush1.msra.mxu0 0.0
    %538 = vmatprep.subr.mxu0 0.0
    %539 = vmatpush1.msra.mxu0 0.0
    %540 = vmatprep.subr.mxu0 0.0
    %541 = vmatpush1.msra.mxu0 0.0
    %542 = vmatprep.subr.mxu0 0.0
    %543 = vmatpush1.msra.mxu0 0.0
    %544 = vmatprep.subr.mxu0 0.0
    %545 = vmatpush1.msra.mxu0 0.0
    %546 = vmatprep.subr.mxu0 0.0
    %547 = vmatpush1.msra.mxu0 0.0
    %548 = vmatprep.subr.mxu0 0.0
    %549 = vmatpush1.msra.mxu0 0.0
    %550 = vmatprep.subr.mxu0 0.0
    %551 = vmatpush1.msra.mxu0 0.0
    %552 = vmatprep.mubr.f32.mxu0 0.0
    %553 = vmatmul.mubr.f32.gmra.mrb[0].mxu0 %v486
    %v554 = vpop.f32.mrb[0].mxu0
    %v555 = vadd.f32 0.0, %v554
    %v556 = vpop.f32.mrb[0].mxu0
    %557 = vdwg.mxu0
    %v558 = vadd.f32 %v162, %v555
    %v559 = vtanh.pop %v558
    %v561 = vsel %vm184, %v559, 0
    %563 = vmatprep.subr.mxu0 0.0
    %564 = vmatpush1.msra.mxu0 %v180
    %565 = vmatprep.subr.mxu0 0.0
    %566 = vmatpush1.msra.mxu0 %v181
    %567 = vmatprep.subr.mxu0 0.0
    %568 = vmatpush1.msra.mxu0 %v182
    %569 = vmatprep.subr.mxu0 0.0
    %570 = vmatpush1.msra.mxu0 %v183
    %571 = vmatprep.subr.mxu0 0.0
    %572 = vmatpush1.msra.mxu0 0.0
    %573 = vmatprep.subr.mxu0 0.0
    %574 = vmatpush1.msra.mxu0 0.0
    %575 = vmatprep.subr.mxu0 0.0
    %576 = vmatpush1.msra.mxu0 0.0
    %577 = vmatprep.subr.mxu0 0.0
    %578 = vmatpush1.msra.mxu0 0.0
    %579 = vmatprep.subr.mxu0 0.0
    %580 = vmatpush1.msra.mxu0 0.0
    %581 = vmatprep.subr.mxu0 0.0
    %582 = vmatpush1.msra.mxu0 0.0
    %583 = vmatprep.subr.mxu0 0.0
    %584 = vmatpush1.msra.mxu0 0.0
    %585 = vmatprep.subr.mxu0 0.0
    %586 = vmatpush1.msra.mxu0 0.0
    %587 = vmatprep.subr.mxu0 0.0
    %588 = vmatpush1.msra.mxu0 0.0
    %589 = vmatprep.subr.mxu0 0.0
    %590 = vmatpush1.msra.mxu0 0.0
    %591 = vmatprep.subr.mxu0 0.0
    %592 = vmatpush1.msra.mxu0 0.0
    %593 = vmatprep.subr.mxu0 0.0
    %594 = vmatpush1.msra.mxu0 0.0
    %595 = vmatprep.subr.mxu0 0.0
    %596 = vmatpush1.msra.mxu0 0.0
    %597 = vmatprep.subr.mxu0 0.0
    %598 = vmatpush1.msra.mxu0 0.0
    %599 = vmatprep.subr.mxu0 0.0
    %600 = vmatpush1.msra.mxu0 0.0
    %601 = vmatprep.subr.mxu0 0.0
    %602 = vmatpush1.msra.mxu0 0.0
    %603 = vmatprep.subr.mxu0 0.0
    %604 = vmatpush1.msra.mxu0 0.0
    %605 = vmatprep.subr.mxu0 0.0
    %606 = vmatpush1.msra.mxu0 0.0
    %607 = vmatprep.subr.mxu0 0.0
    %608 = vmatpush1.msra.mxu0 0.0
    %609 = vmatprep.subr.mxu0 0.0
    %610 = vmatpush1.msra.mxu0 0.0
    %611 = vmatprep.subr.mxu0 0.0
    %612 = vmatpush1.msra.mxu0 0.0
    %613 = vmatprep.subr.mxu0 0.0
    %614 = vmatpush1.msra.mxu0 0.0
    %615 = vmatprep.subr.mxu0 0.0
    %616 = vmatpush1.msra.mxu0 0.0
    %617 = vmatprep.subr.mxu0 0.0
    %618 = vmatpush1.msra.mxu0 0.0
    %619 = vmatprep.subr.mxu0 0.0
    %620 = vmatpush1.msra.mxu0 0.0
    %621 = vmatprep.subr.mxu0 0.0
    %622 = vmatpush1.msra.mxu0 0.0
    %623 = vmatprep.subr.mxu0 0.0
    %624 = vmatpush1.msra.mxu0 0.0
    %625 = vmatprep.subr.mxu0 0.0
    %626 = vmatpush1.msra.mxu0 0.0
    %627 = vmatprep.mubr.f32.mxu0 0.0
    %628 = vmatmul.mubr.f32.gmra.mrb[0].mxu0 %v561
    %v629 = vpop.f32.mrb[0].mxu0
    %v630 = vadd.f32 0.0, %v629
    %v631 = vpop.f32.mrb[0].mxu0
    %632 = vdwg.mxu0
    %v633 = vadd.f32 %v167, %v630
    %v634 = vtanh.pop %v633
    %v636 = vsel %vm184, %v634, 0
    %638 = vmatprep.subr.mxu0 0.0
    %639 = vmatpush1.msra.mxu0 %v180
    %640 = vmatprep.subr.mxu0 0.0
    %641 = vmatpush1.msra.mxu0 %v181
    %642 = vmatprep.subr.mxu0 0.0
    %643 = vmatpush1.msra.mxu0 %v182
    %644 = vmatprep.subr.mxu0 0.0
    %645 = vmatpush1.msra.mxu0 %v183
    %646 = vmatprep.subr.mxu0 0.0
    %647 = vmatpush1.msra.mxu0 0.0
    %648 = vmatprep.subr.mxu0 0.0
    %649 = vmatpush1.msra.mxu0 0.0
    %650 = vmatprep.subr.mxu0 0.0
    %651 = vmatpush1.msra.mxu0 0.0
    %652 = vmatprep.subr.mxu0 0.0
    %653 = vmatpush1.msra.mxu0 0.0
    %654 = vmatprep.subr.mxu0 0.0
    %655 = vmatpush1.msra.mxu0 0.0
    %656 = vmatprep.subr.mxu0 0.0
    %657 = vmatpush1.msra.mxu0 0.0
    %658 = vmatprep.subr.mxu0 0.0
    %659 = vmatpush1.msra.mxu0 0.0
    %660 = vmatprep.subr.mxu0 0.0
    %661 = vmatpush1.msra.mxu0 0.0
    %662 = vmatprep.subr.mxu0 0.0
    %663 = vmatpush1.msra.mxu0 0.0
    %664 = vmatprep.subr.mxu0 0.0
    %665 = vmatpush1.msra.mxu0 0.0
    %666 = vmatprep.subr.mxu0 0.0
    %667 = vmatpush1.msra.mxu0 0.0
    %668 = vmatprep.subr.mxu0 0.0
    %669 = vmatpush1.msra.mxu0 0.0
    %670 = vmatprep.subr.mxu0 0.0
    %671 = vmatpush1.msra.mxu0 0.0
    %672 = vmatprep.subr.mxu0 0.0
    %673 = vmatpush1.msra.mxu0 0.0
    %674 = vmatprep.subr.mxu0 0.0
    %675 = vmatpush1.msra.mxu0 0.0
    %676 = vmatprep.subr.mxu0 0.0
    %677 = vmatpush1.msra.mxu0 0.0
    %678 = vmatprep.subr.mxu0 0.0
    %679 = vmatpush1.msra.mxu0 0.0
    %680 = vmatprep.subr.mxu0 0.0
    %681 = vmatpush1.msra.mxu0 0.0
    %682 = vmatprep.subr.mxu0 0.0
    %683 = vmatpush1.msra.mxu0 0.0
    %684 = vmatprep.subr.mxu0 0.0
    %685 = vmatpush1.msra.mxu0 0.0
    %686 = vmatprep.subr.mxu0 0.0
    %687 = vmatpush1.msra.mxu0 0.0
    %688 = vmatprep.subr.mxu0 0.0
    %689 = vmatpush1.msra.mxu0 0.0
    %690 = vmatprep.subr.mxu0 0.0
    %691 = vmatpush1.msra.mxu0 0.0
    %692 = vmatprep.subr.mxu0 0.0
    %693 = vmatpush1.msra.mxu0 0.0
    %694 = vmatprep.subr.mxu0 0.0
    %695 = vmatpush1.msra.mxu0 0.0
    %696 = vmatprep.subr.mxu0 0.0
    %697 = vmatpush1.msra.mxu0 0.0
    %698 = vmatprep.subr.mxu0 0.0
    %699 = vmatpush1.msra.mxu0 0.0
    %700 = vmatprep.subr.mxu0 0.0
    %701 = vmatpush1.msra.mxu0 0.0
    %702 = vmatprep.mubr.f32.mxu0 0.0
    %703 = vmatmul.mubr.f32.gmra.mrb[0].mxu0 %v636
    %v704 = vpop.f32.mrb[0].mxu0
    %v705 = vadd.f32 0.0, %v704
    %v706 = vpop.f32.mrb[0].mxu0
    %707 = vdwg.mxu0
    %v708 = vadd.f32 %v172, %v705
    %v709 = vtanh.pop %v708
    %v711 = vsel %vm184, %v709, 0
    %713 = vmatprep.subr.mxu0 0.0
    %714 = vmatpush1.msra.mxu0 %v180
    %715 = vmatprep.subr.mxu0 0.0
    %716 = vmatpush1.msra.mxu0 %v181
    %717 = vmatprep.subr.mxu0 0.0
    %718 = vmatpush1.msra.mxu0 %v182
    %719 = vmatprep.subr.mxu0 0.0
    %720 = vmatpush1.msra.mxu0 %v183
    %721 = vmatprep.subr.mxu0 0.0
    %722 = vmatpush1.msra.mxu0 0.0
    %723 = vmatprep.subr.mxu0 0.0
    %724 = vmatpush1.msra.mxu0 0.0
    %725 = vmatprep.subr.mxu0 0.0
    %726 = vmatpush1.msra.mxu0 0.0
    %727 = vmatprep.subr.mxu0 0.0
    %728 = vmatpush1.msra.mxu0 0.0
    %729 = vmatprep.subr.mxu0 0.0
    %730 = vmatpush1.msra.mxu0 0.0
    %731 = vmatprep.subr.mxu0 0.0
    %732 = vmatpush1.msra.mxu0 0.0
    %733 = vmatprep.subr.mxu0 0.0
    %734 = vmatpush1.msra.mxu0 0.0
    %735 = vmatprep.subr.mxu0 0.0
    %736 = vmatpush1.msra.mxu0 0.0
    %737 = vmatprep.subr.mxu0 0.0
    %738 = vmatpush1.msra.mxu0 0.0
    %739 = vmatprep.subr.mxu0 0.0
    %740 = vmatpush1.msra.mxu0 0.0
    %741 = vmatprep.subr.mxu0 0.0
    %742 = vmatpush1.msra.mxu0 0.0
    %743 = vmatprep.subr.mxu0 0.0
    %744 = vmatpush1.msra.mxu0 0.0
    %745 = vmatprep.subr.mxu0 0.0
    %746 = vmatpush1.msra.mxu0 0.0
    %747 = vmatprep.subr.mxu0 0.0
    %748 = vmatpush1.msra.mxu0 0.0
    %749 = vmatprep.subr.mxu0 0.0
    %750 = vmatpush1.msra.mxu0 0.0
    %751 = vmatprep.subr.mxu0 0.0
    %752 = vmatpush1.msra.mxu0 0.0
    %753 = vmatprep.subr.mxu0 0.0
    %754 = vmatpush1.msra.mxu0 0.0
    %755 = vmatprep.subr.mxu0 0.0
    %756 = vmatpush1.msra.mxu0 0.0
    %757 = vmatprep.subr.mxu0 0.0
    %758 = vmatpush1.msra.mxu0 0.0
    %759 = vmatprep.subr.mxu0 0.0
    %760 = vmatpush1.msra.mxu0 0.0
    %761 = vmatprep.subr.mxu0 0.0
    %762 = vmatpush1.msra.mxu0 0.0
    %763 = vmatprep.subr.mxu0 0.0
    %764 = vmatpush1.msra.mxu0 0.0
    %765 = vmatprep.subr.mxu0 0.0
    %766 = vmatpush1.msra.mxu0 0.0
    %767 = vmatprep.subr.mxu0 0.0
    %768 = vmatpush1.msra.mxu0 0.0
    %769 = vmatprep.subr.mxu0 0.0
    %770 = vmatpush1.msra.mxu0 0.0
    %771 = vmatprep.subr.mxu0 0.0
    %772 = vmatpush1.msra.mxu0 0.0
    %773 = vmatprep.subr.mxu0 0.0
    %774 = vmatpush1.msra.mxu0 0.0
    %775 = vmatprep.subr.mxu0 0.0
    %776 = vmatpush1.msra.mxu0 0.0
    %777 = vmatprep.mubr.f32.mxu0 0.0
    %778 = vmatmul.mubr.f32.gmra.mrb[0].mxu0 %v711
    %v779 = vpop.f32.mrb[0].mxu0
    %v780 = vadd.f32 0.0, %v779
    %v781 = vpop.f32.mrb[0].mxu0
    %782 = vdwg.mxu0
    %v783 = vadd.f32 %v177, %v780
    %v784 = vtanh.pop %v783
    %785 = vst.msk [vmem:[#allocation2] sm:$0xff] %vm184, %v784
    // Predicated region
    $region18: #{tpu_custom_call.1} parent=1 // pred_check
      _
    $region19: #{tpu_custom_call.1} parent=1 // pred_check_branch
      %787 = sbr.rel (0) target = $region21
    $region20: #{tpu_custom_call.1} parent=1 // pred_region
      %s789 = ssub.s32 128, 128
      %790 = vsyncadd [#allocation3], %s789
      %s792 = sshll.u32 [#allocation2], 4
      %s793 = int_to_ptr.vmem [resolvable:$true] %s792
      %795 = dma.vmem_to_hbm [thread:$0]  %s793, 128, %s4, [#allocation3]
    $region21: #{tpu_custom_call.1} parent=1 // pred_fallthru
      _
    // Predicated region
    $region22: #{tpu_custom_call.1} parent=1 // pred_check
      _
    $region23: #{tpu_custom_call.1} parent=1 // pred_check_branch
      %797 = sbr.rel (0) target = $region25
    $region24: #{tpu_custom_call.1} parent=1 // pred_region
      %798 = dma.done [#allocation3], 128
    $region25: #{tpu_custom_call.1} parent=1 // pred_fallthru
      _
    %799 = vsyncpa [#allocation3], 1

</llo_original>
